<compile_context>
chip_gen: v7x
topology: tpu7x:2x2x1
jax: 0.10.0
libtpu: 0.0.40
codegen_flags: <defaults>
</compile_context>

<pallas_src>
import numpy as np
import jax
import jax.numpy as jnp
from jax.experimental import pallas as pl
from jax.experimental.pallas import tpu as pltpu

N_QUBITS = 4
N_LAYERS = 2
DIM = 2 ** N_QUBITS  # 16
OUT_ROWS = 8         # 4 expvals + 4 zero-pad rows -> sublane-aligned, unmasked stores


# ---------------------------------------------------------------------------
# Host-side constant / weight-matrix construction (no per-sample work)
# ---------------------------------------------------------------------------
def _bit(k, wire):
    # PennyLane default.qubit: wire 0 is the most-significant bit of the basis index.
    return (k >> (N_QUBITS - 1 - wire)) & 1


def _flip(k, wire):
    return k ^ (1 << (N_QUBITS - 1 - wire))


def _ring_pairs():
    if N_QUBITS > 2:
        return [(i, (i + 1) % N_QUBITS) for i in range(N_QUBITS)]
    if N_QUBITS == 2:
        return [(0, 1)]
    return []


def _ring_permutation_matrix():
    """Column-convention operator R with R|k> = |f(k)>, f = CNOT(0,1),CNOT(1,2),...,CNOT(n-1,0)."""
    R = np.zeros((DIM, DIM), np.float32)
    for k in range(DIM):
        j = k
        for (c, t) in _ring_pairs():
            if _bit(j, c) == 1:
                j = _flip(j, t)
        R[j, k] = 1.0
    return R


def _z_sign_matrix_padded():
    """(8,16): rows 0..3 hold PauliZ signs (1-2*bit), rows 4..7 are zero pad."""
    Z = np.zeros((OUT_ROWS, DIM), np.float32)
    for q in range(N_QUBITS):
        for k in range(DIM):
            Z[q, k] = 1.0 - 2.0 * _bit(k, q)
    return Z


def build_weight_matrix(weights):
    """Fold BasicEntanglerLayers(weights) and the embedding phase (-i)^popcount(k) into a real
    (32,16) matrix [Re(V); Im(V)] so that the final state is V @ M with M the real magnitude vector."""
    w = jnp.asarray(weights, jnp.float32)
    ring = jnp.asarray(_ring_permutation_matrix(), jnp.complex64)
    I2 = jnp.eye(2, dtype=jnp.complex64)
    X2 = jnp.asarray(np.array([[0.0, 1.0], [1.0, 0.0]]), jnp.complex64)

    def rx2(theta):
        return jnp.cos(theta * 0.5) * I2 - 1j * jnp.sin(theta * 0.5) * X2

    U = jnp.eye(DIM, dtype=jnp.complex64)
    for l in range(N_LAYERS):
        rxl = rx2(w[l, 0])
        for q in range(1, N_QUBITS):
            rxl = jnp.kron(rxl, rx2(w[l, q]))     # wire 0 leftmost => MSB
        U = ring @ (rxl @ U)

    # |psi_emb(x)>_k = (-i)^popcount(k) * M_k(x)  with M_k real >= 0 products of cos/sin
    phase = np.array([(-1j) ** bin(k).count("1") for k in range(DIM)], np.complex64)
    V = U * jnp.asarray(phase)[None, :]
    return jnp.concatenate([jnp.real(V), jnp.imag(V)], axis=0).astype(jnp.float32)  # (32, 16)


# ---------------------------------------------------------------------------
# Pallas kernel (lane-dense: batch on the last axis)
# ---------------------------------------------------------------------------
def quantum_kernel(x_ref, vs_ref, zs_ref, o_ref):
    Bt = x_ref.shape[1]
    half = x_ref[...] * 0.5                 # (4, Bt) angles / 2
    c = jnp.cos(half)                       # one full-width EUP call
    s = jnp.sin(half)

    # Embedding magnitudes: M[k, b] = prod_q (cos_q if bit_q(k)==0 else sin_q)   -> (16, Bt)
    kbits = jax.lax.broadcasted_iota(jnp.int32, (DIM, Bt), 0)
    M = None
    for q in range(N_QUBITS):
        bit = (kbits >> (N_QUBITS - 1 - q)) & 1
        fac = jnp.where(bit == 0, c[q:q + 1, :], s[q:q + 1, :])   # sublane-broadcast select
        M = fac if M is None else M * fac

    # Final state (weights folded in host-side): phi = V @ M, stacked Re/Im in one matmul
    phi = jnp.dot(vs_ref[...], M, preferred_element_type=jnp.float32)   # (32, Bt)
    pr = phi[:DIM, :]
    pi = phi[DIM:, :]
    probs = pr * pr + pi * pi                                           # (16, Bt)

    # <Z_q> projection (rows 4..7 of zs are zero pad -> aligned (8, Bt) store)
    o_ref[...] = jnp.dot(zs_ref[...], probs, preferred_element_type=jnp.float32)


# ---------------------------------------------------------------------------
# Wrapper
# ---------------------------------------------------------------------------
def _round_up(a, m):
    return -(-a // m) * m


def _pick_tile(B, b_tile_max):
    # multiples of 128 lanes; try to give the 1-D grid >=4 steps (megacore / pipelining),
    # capped at b_tile_max so per-step DMAs stay large while VMEM use stays tiny.
    target = _round_up(max(1, -(-B // 4)), 128)
    return max(128, min(_round_up(b_tile_max, 128), target))


def quantum_encoder_forward(x, weights, *, b_tile=2048):
    x2 = x.reshape(-1, N_QUBITS).astype(jnp.float32)        # matches torch .view(-1, n_qubits)
    B = x2.shape[0]

    tile = _pick_tile(B, b_tile)
    n_blocks = -(-B // tile)
    Bp = n_blocks * tile
    if Bp != B:
        x2 = jnp.pad(x2, ((0, Bp - B), (0, 0)))
    x_l = x2.T                                              # (4, Bp): batch on lanes

    VS = build_weight_matrix(weights)                       # (32, 16) f32
    ZS = jnp.asarray(_z_sign_matrix_padded())               # (8, 16)  f32

    out = pl.pallas_call(
        quantum_kernel,
        out_shape=jax.ShapeDtypeStruct((OUT_ROWS, Bp), jnp.float32),
        grid=(n_blocks,),
        in_specs=[
            pl.BlockSpec((N_QUBITS, tile), lambda i: (0, i)),      # angles tile (lane-dense)
            pl.BlockSpec((2 * DIM, DIM), lambda i: (0, 0)),        # folded weight/phase matrix
            pl.BlockSpec((OUT_ROWS, DIM), lambda i: (0, 0)),       # padded PauliZ sign matrix
        ],
        out_specs=pl.BlockSpec((OUT_ROWS, tile), lambda i: (0, i)),
        compiler_params=pltpu.CompilerParams(dimension_semantics=("parallel",)),
    )(x_l, VS, ZS)

    return out[:N_QUBITS, :B].T                             # (B, n_qubits)


# ---------------------------------------------------------------------------
# Pure NumPy reference (direct statevector simulation) for a correctness check
# ---------------------------------------------------------------------------
def reference_forward(x, weights):
    # row-vector simulation with explicit per-wire RX and CNOT-ring permutations (float64)
    P = np.zeros((N_QUBITS, DIM, DIM), np.float64)
    for q in range(N_QUBITS):
        for k in range(DIM):
            P[q, k, _flip(k, q)] = 1.0
    ring = np.zeros((DIM, DIM), np.float64)
    for k in range(DIM):
        j = k
        for (c, t) in _ring_pairs():
            if _bit(j, c) == 1:
                j = _flip(j, t)
        ring[k, j] = 1.0
    sign = np.zeros((DIM, N_QUBITS), np.float64)
    for k in range(DIM):
        for q in range(N_QUBITS):
            sign[k, q] = 1.0 - 2.0 * _bit(k, q)

    x2 = np.asarray(x, np.float64).reshape(-1, N_QUBITS)
    w = np.asarray(weights, np.float64)
    B = x2.shape[0]
    state = np.zeros((B, DIM), np.complex128)
    state[:, 0] = 1.0

    def rx_all(state, theta_col, q):
        c = np.cos(theta_col / 2.0)
        s = np.sin(theta_col / 2.0)
        return c * state - 1j * s * (state @ P[q])

    for q in range(N_QUBITS):
        state = rx_all(state, x2[:, q:q + 1], q)
    for l in range(N_LAYERS):
        for q in range(N_QUBITS):
            state = rx_all(state, np.array([[w[l, q]]]), q)
        state = state @ ring
    probs = np.abs(state) ** 2
    return probs @ sign


if __name__ == "__main__":
    key = jax.random.PRNGKey(0)
    kx, kw = jax.random.split(key)

    # Small latent-feature input (NCHW, like a conv feature map feeding the encoder).
    x = jax.random.normal(kx, (2, 4, 16, 16), dtype=jnp.float32)
    # nn.Parameter(0.01 * randn(n_layers, n_qubits)) -- deterministic synthetic init.
    weights = 0.01 * jax.random.normal(kw, (N_LAYERS, N_QUBITS), dtype=jnp.float32)

    out = quantum_encoder_forward(x, weights)
    out = jax.block_until_ready(out)

    expected_rows = x.size // N_QUBITS
    assert out.shape == (expected_rows, N_QUBITS), out.shape

    ref = reference_forward(np.asarray(x), np.asarray(weights))
    err = np.max(np.abs(np.asarray(out) - ref))
    if err > 5e-5:
        raise AssertionError(f"kernel mismatch vs reference, max abs err {err}")

    print("KERNEL_OK")
</pallas_src>

<mosaic_0001>
module attributes {stable_mosaic.version = 11 : i64} {
  func.func @quantum_kernel(%arg0: i32, %arg1: memref<4x128xf32, #tpu.memory_space<vmem>>, %arg2: memref<32x16xf32, #tpu.memory_space<vmem>>, %arg3: memref<8x16xf32, #tpu.memory_space<vmem>>, %arg4: memref<8x128xf32, #tpu.memory_space<vmem>>) attributes {dimension_semantics = [#tpu.dimension_semantics<parallel>], iteration_bounds = array<i64: 4>, scalar_prefetch = 0 : i64, scratch_operands = 0 : i64, tpu.core_type = #tpu.core_type<tc>, window_params = [{transform_indices = @transform_0, window_bounds = array<i64: 4, 128>}, {pipeline_mode = #tpu.pipeline_mode<synchronous>, transform_indices = @transform_1, window_bounds = array<i64: 32, 16>}, {pipeline_mode = #tpu.pipeline_mode<synchronous>, transform_indices = @transform_2, window_bounds = array<i64: 8, 16>}, {transform_indices = @transform_3, window_bounds = array<i64: 8, 128>}]} {
    %c0 = arith.constant 0 : index
    %c0_0 = arith.constant 0 : index
    %0 = vector.load %arg1[%c0, %c0_0] : memref<4x128xf32, #tpu.memory_space<vmem>>, vector<4x128xf32>
    %cst = arith.constant 5.000000e-01 : f32
    %1 = vector.broadcast %cst : f32 to vector<4x128xf32>
    %2 = arith.mulf %0, %1 : vector<4x128xf32>
    %3 = math.cos %2 : vector<4x128xf32>
    %4 = math.sin %2 : vector<4x128xf32>
    %5 = tpu.iota {dimensions = array<i32: 0>} : vector<16x128xi32>
    %c3_i32 = arith.constant 3 : i32
    %6 = vector.broadcast %c3_i32 : i32 to vector<16x128xi32>
    %7 = arith.shrsi %5, %6 : vector<16x128xi32>
    %c1_i32 = arith.constant 1 : i32
    %8 = vector.broadcast %c1_i32 : i32 to vector<16x128xi32>
    %9 = arith.andi %7, %8 : vector<16x128xi32>
    %c0_i32 = arith.constant 0 : i32
    %10 = vector.broadcast %c0_i32 : i32 to vector<16x128xi32>
    %11 = arith.cmpi eq, %9, %10 : vector<16x128xi32>
    %12 = vector.extract_strided_slice %3 {offsets = [0, 0], sizes = [1, 128], strides = [1, 1]} : vector<4x128xf32> to vector<1x128xf32>
    %13 = vector.extract_strided_slice %4 {offsets = [0, 0], sizes = [1, 128], strides = [1, 1]} : vector<4x128xf32> to vector<1x128xf32>
    %14 = vector.shape_cast %12 : vector<1x128xf32> to vector<1x128xf32>
    %15 = vector.broadcast %14 : vector<1x128xf32> to vector<16x128xf32>
    %16 = vector.shape_cast %13 : vector<1x128xf32> to vector<1x128xf32>
    %17 = vector.broadcast %16 : vector<1x128xf32> to vector<16x128xf32>
    %18 = arith.select %11, %15, %17 : vector<16x128xi1>, vector<16x128xf32>
    %c2_i32 = arith.constant 2 : i32
    %19 = vector.broadcast %c2_i32 : i32 to vector<16x128xi32>
    %20 = arith.shrsi %5, %19 : vector<16x128xi32>
    %c1_i32_1 = arith.constant 1 : i32
    %21 = vector.broadcast %c1_i32_1 : i32 to vector<16x128xi32>
    %22 = arith.andi %20, %21 : vector<16x128xi32>
    %c0_i32_2 = arith.constant 0 : i32
    %23 = vector.broadcast %c0_i32_2 : i32 to vector<16x128xi32>
    %24 = arith.cmpi eq, %22, %23 : vector<16x128xi32>
    %25 = vector.extract_strided_slice %3 {offsets = [1, 0], sizes = [1, 128], strides = [1, 1]} : vector<4x128xf32> to vector<1x128xf32>
    %26 = vector.extract_strided_slice %4 {offsets = [1, 0], sizes = [1, 128], strides = [1, 1]} : vector<4x128xf32> to vector<1x128xf32>
    %27 = vector.shape_cast %25 : vector<1x128xf32> to vector<1x128xf32>
    %28 = vector.broadcast %27 : vector<1x128xf32> to vector<16x128xf32>
    %29 = vector.shape_cast %26 : vector<1x128xf32> to vector<1x128xf32>
    %30 = vector.broadcast %29 : vector<1x128xf32> to vector<16x128xf32>
    %31 = arith.select %24, %28, %30 : vector<16x128xi1>, vector<16x128xf32>
    %32 = arith.mulf %18, %31 : vector<16x128xf32>
    %c1_i32_3 = arith.constant 1 : i32
    %33 = vector.broadcast %c1_i32_3 : i32 to vector<16x128xi32>
    %34 = arith.shrsi %5, %33 : vector<16x128xi32>
    %c1_i32_4 = arith.constant 1 : i32
    %35 = vector.broadcast %c1_i32_4 : i32 to vector<16x128xi32>
    %36 = arith.andi %34, %35 : vector<16x128xi32>
    %c0_i32_5 = arith.constant 0 : i32
    %37 = vector.broadcast %c0_i32_5 : i32 to vector<16x128xi32>
    %38 = arith.cmpi eq, %36, %37 : vector<16x128xi32>
    %39 = vector.extract_strided_slice %3 {offsets = [2, 0], sizes = [1, 128], strides = [1, 1]} : vector<4x128xf32> to vector<1x128xf32>
    %40 = vector.extract_strided_slice %4 {offsets = [2, 0], sizes = [1, 128], strides = [1, 1]} : vector<4x128xf32> to vector<1x128xf32>
    %41 = vector.shape_cast %39 : vector<1x128xf32> to vector<1x128xf32>
    %42 = vector.broadcast %41 : vector<1x128xf32> to vector<16x128xf32>
    %43 = vector.shape_cast %40 : vector<1x128xf32> to vector<1x128xf32>
    %44 = vector.broadcast %43 : vector<1x128xf32> to vector<16x128xf32>
    %45 = arith.select %38, %42, %44 : vector<16x128xi1>, vector<16x128xf32>
    %46 = arith.mulf %32, %45 : vector<16x128xf32>
    %c0_i32_6 = arith.constant 0 : i32
    %47 = vector.broadcast %c0_i32_6 : i32 to vector<16x128xi32>
    %48 = arith.shrsi %5, %47 : vector<16x128xi32>
    %c1_i32_7 = arith.constant 1 : i32
    %49 = vector.broadcast %c1_i32_7 : i32 to vector<16x128xi32>
    %50 = arith.andi %48, %49 : vector<16x128xi32>
    %c0_i32_8 = arith.constant 0 : i32
    %51 = vector.broadcast %c0_i32_8 : i32 to vector<16x128xi32>
    %52 = arith.cmpi eq, %50, %51 : vector<16x128xi32>
    %53 = vector.extract_strided_slice %3 {offsets = [3, 0], sizes = [1, 128], strides = [1, 1]} : vector<4x128xf32> to vector<1x128xf32>
    %54 = vector.extract_strided_slice %4 {offsets = [3, 0], sizes = [1, 128], strides = [1, 1]} : vector<4x128xf32> to vector<1x128xf32>
    %55 = vector.shape_cast %53 : vector<1x128xf32> to vector<1x128xf32>
    %56 = vector.broadcast %55 : vector<1x128xf32> to vector<16x128xf32>
    %57 = vector.shape_cast %54 : vector<1x128xf32> to vector<1x128xf32>
    %58 = vector.broadcast %57 : vector<1x128xf32> to vector<16x128xf32>
    %59 = arith.select %52, %56, %58 : vector<16x128xi1>, vector<16x128xf32>
    %60 = arith.mulf %46, %59 : vector<16x128xf32>
    %c0_9 = arith.constant 0 : index
    %c0_10 = arith.constant 0 : index
    %61 = vector.load %arg2[%c0_9, %c0_10] : memref<32x16xf32, #tpu.memory_space<vmem>>, vector<32x16xf32>
    %cst_11 = arith.constant dense<0.000000e+00> : vector<32x128xf32>
    %62 = tpu.matmul %61, %60, %cst_11 {dimension_numbers = #tpu.dot_dimension_numbers<[1], [0], [0], [1], [0, 0, 1, 1], [], []>} : vector<32x16xf32>, vector<16x128xf32>, vector<32x128xf32> -> vector<32x128xf32>
    %63 = vector.extract_strided_slice %62 {offsets = [0, 0], sizes = [16, 128], strides = [1, 1]} : vector<32x128xf32> to vector<16x128xf32>
    %64 = vector.extract_strided_slice %62 {offsets = [16, 0], sizes = [16, 128], strides = [1, 1]} : vector<32x128xf32> to vector<16x128xf32>
    %65 = arith.mulf %63, %63 : vector<16x128xf32>
    %66 = arith.mulf %64, %64 : vector<16x128xf32>
    %67 = arith.addf %65, %66 : vector<16x128xf32>
    %c0_12 = arith.constant 0 : index
    %c0_13 = arith.constant 0 : index
    %68 = vector.load %arg3[%c0_12, %c0_13] : memref<8x16xf32, #tpu.memory_space<vmem>>, vector<8x16xf32>
    %cst_14 = arith.constant dense<0.000000e+00> : vector<8x128xf32>
    %69 = tpu.matmul %68, %67, %cst_14 {dimension_numbers = #tpu.dot_dimension_numbers<[1], [0], [0], [1], [0, 0, 1, 1], [], []>} : vector<8x16xf32>, vector<16x128xf32>, vector<8x128xf32> -> vector<8x128xf32>
    %c0_15 = arith.constant 0 : index
    %c0_16 = arith.constant 0 : index
    %70 = vector.load %arg4[%c0_15, %c0_16] : memref<8x128xf32, #tpu.memory_space<vmem>>, vector<8x128xf32>
    tpu.vector_store %arg4[%c0_15, %c0_16], %69 {strides = array<i32>} : memref<8x128xf32, #tpu.memory_space<vmem>>, vector<8x128xf32>,
    return
  }
  func.func @transform_0(%arg0: i32) -> (i32, i32) {
    %c0_i32 = arith.constant 0 : i32
    %c0_i32_0 = arith.constant 0 : i32
    return %c0_i32, %arg0 : i32, i32
  }
  func.func @transform_1(%arg0: i32) -> (i32, i32) {
    %c0_i32 = arith.constant 0 : i32
    %c0_i32_0 = arith.constant 0 : i32
    %c0_i32_1 = arith.constant 0 : i32
    return %c0_i32, %c0_i32_0 : i32, i32
  }
  func.func @transform_2(%arg0: i32) -> (i32, i32) {
    %c0_i32 = arith.constant 0 : i32
    %c0_i32_0 = arith.constant 0 : i32
    %c0_i32_1 = arith.constant 0 : i32
    return %c0_i32, %c0_i32_0 : i32, i32
  }
  func.func @transform_3(%arg0: i32) -> (i32, i32) {
    %c0_i32 = arith.constant 0 : i32
    %c0_i32_0 = arith.constant 0 : i32
    return %c0_i32, %arg0 : i32, i32
  }
}

</mosaic_0001>

<llo_original>
// kernel: tpu_custom_call.1
$region0: #{tpu_custom_call.1}
  #allocation0 [shape = 'u32[]', space=smem, size = 0x4, offset = 0x4, fixed_abs, tag = 'smem constant byte address 0x4 - core index']
  #allocation1 [shape = 'u32[144,128]{1,0:T(1,128)}', space=vmem, size = 0x12000, scoped, tag = 'internal scratch']
  %s0 = inlined_call_operand.vmem [shape: f32[4,512], index: 0, kind: input, shape index: {}]
  %s1 = inlined_call_operand.vmem [shape: f32[32,16], index: 1, kind: input, shape index: {}]
  %s2 = inlined_call_operand.vmem [shape: f32[8,16], index: 2, kind: input, shape index: {}]
  %s3 = inlined_call_operand.hbm [shape: f32[8,512], index: 3, kind: output, shape index: {}]
  %s4 = sld [smem:[#allocation0]]
  $region45: #{tpu_custom_call.1} parent=0
    _
  %s6 = ssub.s32 1, %s4
  %s7 = scalar_select 0, %s6, %s4
  $region1: #{tpu_custom_call.1} parent=0
    #allocation2 [shape = 'u8[8192]{0}', space=vmem, size = 0x2000, scoped, tag = 'output window, operand 0']
    #allocation3 [shape = 's32[2]{0}', space=sflag, size = 0x8, scoped, tag = 'scoped memory for tpu_custom_call.1']
    %8 = vsyncpa [#allocation3], 0
    %s9 = scalar_lea.sflag [#allocation3], 1
    %10 = vsyncpa %s9, 0
    loop: start=0, step=1, limit=6
    $region2: #{tpu_custom_call.1} parent=1 // loop_pre_header
      _
    $region3: #{tpu_custom_call.1} parent=1 // loop_header
      %s12 = sphi 0, %s16
      %p13 = scmp.ge.s32.totalorder %s12, 6
      %s22 = sphi 0, %s24
      %s25 = sphi 0, %s22
      %s26 = sphi 0, %s25
      %s42 = sphi 0, %s26
      %s46 = sphi 0, %s46
      %s48 = sphi 0, %s46
      %s49 = sphi 0, %s48
      %s63 = sphi 0, %s49
      %s67 = sphi 0, %s67
      %s69 = sphi 0, %s67
      %s70 = sphi 0, %s69
      %s84 = sphi 0, %s70
      %s90 = sphi 0, %s92
      %s93 = sphi 0, %s90
      %s94 = sphi 0, %s93
      %s110 = sphi 0, %s94
    $region4: #{tpu_custom_call.1} parent=1 // loop_header_branch
      %15 = sbr.rel (%p13) target = $region8
    $region5: #{tpu_custom_call.1} parent=1 // loop_body
      %s17 = ssub.s32 %s12, 1
      %s18 = ssub.s32 %s12, 2
      %s19 = sadd.s32 %s12, 1
      %s20 = ssub.s32 %s12, %s19
      %p21 = scmp.eq.s32.totalorder %s20, 0
      %s23 = sadd.s32 %s22, 1
      %s24 = scalar_select %p21, %s22, %s23
      %p27 = pneg %p21
      %p28 = scmp.eq.s32.totalorder %s12, 3
      %p29 = por %p27, %p28
      %p30 = scmp.ne.s32.totalorder %s22, %s25
      %p31 = scmp.eq.s32.totalorder %s12, 0
      %p32 = por %p30, %p31
      %p33 = scmp.ne.s32.totalorder %s22, %s25
      %p34 = scmp.eq.s32.totalorder %s17, 3
      %p35 = por %p33, %p34
      %p36 = scmp.ne.s32.totalorder %s25, %s26
      %p37 = scmp.eq.s32.totalorder %s17, 0
      %p38 = por %p36, %p37
      %p39 = scmp.ne.s32.totalorder %s25, %s26
      %p40 = scmp.eq.s32.totalorder %s18, 3
      %p41 = por %p39, %p40
      %p43 = scmp.ne.s32.totalorder %s26, %s42
      %p44 = scmp.eq.s32.totalorder %s18, 0
      %p45 = por %p43, %p44
      %s47 = sadd.s32 %s46, 1
      %p50 = scmp.eq.s32.totalorder %s12, 3
      %p51 = scmp.ne.s32.totalorder %s46, %s48
      %p52 = scmp.eq.s32.totalorder %s12, 0
      %p53 = por %p51, %p52
      %p54 = scmp.ne.s32.totalorder %s46, %s48
      %p55 = scmp.eq.s32.totalorder %s17, 3
      %p56 = por %p54, %p55
      %p57 = scmp.ne.s32.totalorder %s48, %s49
      %p58 = scmp.eq.s32.totalorder %s17, 0
      %p59 = por %p57, %p58
      %p60 = scmp.ne.s32.totalorder %s48, %s49
      %p61 = scmp.eq.s32.totalorder %s18, 3
      %p62 = por %p60, %p61
      %p64 = scmp.ne.s32.totalorder %s49, %s63
      %p65 = scmp.eq.s32.totalorder %s18, 0
      %p66 = por %p64, %p65
      %s68 = sadd.s32 %s67, 1
      %p71 = scmp.eq.s32.totalorder %s12, 3
      %p72 = scmp.ne.s32.totalorder %s67, %s69
      %p73 = scmp.eq.s32.totalorder %s12, 0
      %p74 = por %p72, %p73
      %p75 = scmp.ne.s32.totalorder %s67, %s69
      %p76 = scmp.eq.s32.totalorder %s17, 3
      %p77 = por %p75, %p76
      %p78 = scmp.ne.s32.totalorder %s69, %s70
      %p79 = scmp.eq.s32.totalorder %s17, 0
      %p80 = por %p78, %p79
      %p81 = scmp.ne.s32.totalorder %s69, %s70
      %p82 = scmp.eq.s32.totalorder %s18, 3
      %p83 = por %p81, %p82
      %p85 = scmp.ne.s32.totalorder %s70, %s84
      %p86 = scmp.eq.s32.totalorder %s18, 0
      %p87 = por %p85, %p86
      %s88 = ssub.s32 %s12, %s19
      %p89 = scmp.eq.s32.totalorder %s88, 0
      %s91 = sadd.s32 %s90, 1
      %s92 = scalar_select %p89, %s90, %s91
      %p95 = pneg %p89
      %p96 = scmp.eq.s32.totalorder %s12, 3
      %p97 = por %p95, %p96
      %p98 = scmp.ne.s32.totalorder %s90, %s93
      %p99 = scmp.eq.s32.totalorder %s12, 0
      %p100 = por %p98, %p99
      %p101 = scmp.ne.s32.totalorder %s90, %s93
      %p102 = scmp.eq.s32.totalorder %s17, 3
      %p103 = por %p101, %p102
      %p104 = scmp.ne.s32.totalorder %s93, %s94
      %p105 = scmp.eq.s32.totalorder %s17, 0
      %p106 = por %p104, %p105
      %p107 = scmp.ne.s32.totalorder %s93, %s94
      %p108 = scmp.eq.s32.totalorder %s18, 3
      %p109 = por %p107, %p108
      %p111 = scmp.ne.s32.totalorder %s94, %s110
      %p112 = scmp.eq.s32.totalorder %s18, 0
      %p113 = por %p111, %p112
      %p114 = scmp.le.s32.totalorder 1, %s12
      %p115 = scmp.lt.s32.totalorder %s12, 5
      %p116 = pnand %p114, %p115
      %p117 = pneg %p116
      // Predicated region
      $region9: #{tpu_custom_call.1} parent=5 // pred_check
        _
      $region10: #{tpu_custom_call.1} parent=5 // pred_check_branch
        %119 = sbr.rel (%p116) target = $region12
      $region11: #{tpu_custom_call.1} parent=5 // pred_region
        %s120 = ssub.s32 %s12, 1
        // Predicated region
        $region13: #{tpu_custom_call.1} parent=11 // pred_check
          %p121 = pneg %p59
        $region14: #{tpu_custom_call.1} parent=11 // pred_check_branch
          %123 = sbr.rel (%p121) target = $region16
        $region15: #{tpu_custom_call.1} parent=11 // pred_region
          _
        $region16: #{tpu_custom_call.1} parent=11 // pred_fallthru
          _
        // Predicated region
        $region17: #{tpu_custom_call.1} parent=11 // pred_check
          %p124 = pneg %p80
        $region18: #{tpu_custom_call.1} parent=11 // pred_check_branch
          %126 = sbr.rel (%p124) target = $region20
        $region19: #{tpu_custom_call.1} parent=11 // pred_region
          _
        $region20: #{tpu_custom_call.1} parent=11 // pred_fallthru
          _
      $region12: #{tpu_custom_call.1} parent=5 // pred_fallthru
        _
      %p127 = scmp.lt.s32.totalorder %s12, 4
      // Predicated region
      $region21: #{tpu_custom_call.1} parent=5 // pred_check
        %p128 = pneg %p127
      $region22: #{tpu_custom_call.1} parent=5 // pred_check_branch
        %130 = sbr.rel (%p128) target = $region24
      $region23: #{tpu_custom_call.1} parent=5 // pred_region
        // Predicated region
        $region25: #{tpu_custom_call.1} parent=23 // pred_check
          %p131 = pneg %p32
        $region26: #{tpu_custom_call.1} parent=23 // pred_check_branch
          %133 = sbr.rel (%p131) target = $region28
        $region27: #{tpu_custom_call.1} parent=23 // pred_region
          %p134 = scmp.lt.s32.totalorder %s12, 3
          %s135 = scalar_select %p134, %s12, 3
          %s136 = smul.addr %s135, 4
          %s137 = scalar_lea.vmem %s0, %s136
        $region28: #{tpu_custom_call.1} parent=23 // pred_fallthru
          _
      $region24: #{tpu_custom_call.1} parent=5 // pred_fallthru
        _
      %p138 = scmp.le.s32.totalorder 1, %s12
      %p139 = scmp.lt.s32.totalorder %s12, 5
      %p140 = pnand %p138, %p139
      %p141 = pneg %p140
      // Predicated region
      $region29: #{tpu_custom_call.1} parent=5 // pred_check
        _
      $region30: #{tpu_custom_call.1} parent=5 // pred_check_branch
        %143 = sbr.rel (%p140) target = $region32
      $region31: #{tpu_custom_call.1} parent=5 // pred_region
        %s144 = ssub.s32 %s12, 1
        %p145 = scmp.lt.s32.totalorder %s17, 3
        %s146 = scalar_select %p145, %s17, 3
        %s147 = smul.addr %s146, 4
        %s148 = scalar_lea.vmem %s0, %s147
        %p149 = pneg %p38
        %p150 = pneg %p35
        %p151 = pneg %p59
        %p152 = pneg %p56
        %p153 = pneg %p80
        %p154 = pneg %p77
        %p155 = pneg %p106
        %p156 = pneg %p103
        %s157 = sand.u32 %s93, 1
        %s158 = scalar_lea.sflag [#allocation3], %s157
        %s159 = sand.u32 %s93, 1
        %s160 = smul.addr %s159, 8
        %s161 = scalar_lea.vmem [#allocation2], %s160
        %p162 = scmp.lt.s32.totalorder %s17, 3
        %s163 = scalar_select %p162, %s17, 3
        %s164 = smul.addr %s163, 4
        %s165 = scalar_lea.vmem %s0, %s164
        %v166 = vld [vmem:[%s165] sm:$0xf]
        %v167 = vmul.f32 %v166, 0.5
        %v168 = vand.u32 2147483647, %v167
        %vm169 = vcmp.le.f32.partialorder %v168, 0.7853982
        %vm170 = vcmp.lt.s32.totalorder %v167, 0
        %v171 = vand.u32 %v167, 2139095040
        %v172 = vshrl.u32 %v171, 23
        %v173 = vsub.s32 %v172, 127
        %v174 = vand.u32 2147483647, %v167
        %v175 = vand.u32 %v174, 8388607
        %v176 = vor.u32 %v175, 8388608
        %v177 = vsub.s32 0, %v176
        %v178 = vadd.s32 %v173, 1
        %vm179 = vcmp.gt.s32.totalorder %v178, 0
        %v180 = vsel %vm179, %v178, 0
        %v181 = vshrl.u32 %v180, 5
        %v182 = vand.u32 %v180, 31
        %v183 = vsub.s32 32, %v182
        %v184 = vshrl.u32 683565275, %v183
        %v185 = vshll.u32 683565275, %v182
        %v186 = vshrl.u32 2475754826, %v183
        %v187 = vor.u32 %v185, %v186
        %v188 = vshll.u32 2475754826, %v182
        %v189 = vshrl.u32 2131351028, %v183
        %v190 = vor.u32 %v188, %v189
        %v191 = vshll.u32 2131351028, %v182
        %v192 = vshrl.u32 2102212464, %v183
        %v193 = vor.u32 %v191, %v192
        %v194 = vshll.u32 2102212464, %v182
        %v195 = vshrl.u32 920167782, %v183
        %v196 = vor.u32 %v194, %v195
        %v197 = vshll.u32 920167782, %v182
        %v198 = vshrl.u32 1326507024, %v183
        %v199 = vor.u32 %v197, %v198
        %vm200 = vcmp.lt.s32.totalorder %v181, 1
        %vm201 = vcmp.lt.s32.totalorder %v181, 2
        %vm202 = vcmp.lt.s32.totalorder %v181, 3
        %vm203 = vcmp.lt.s32.totalorder %v181, 4
        %v204 = vsel %vm200, %v184, %v187
        %v205 = vsel %vm203, %v193, 2102212464
        %v206 = vsel %vm202, %v190, %v205
        %v207 = vsel %vm201, %v204, %v206
        %v208 = vsel %vm200, %v187, %v190
        %v209 = vsel %vm203, %v196, 920167782
        %v210 = vsel %vm202, %v193, %v209
        %v211 = vsel %vm201, %v208, %v210
        %v212 = vsel %vm200, %v190, %v193
        %v213 = vsel %vm203, %v199, 1326507024
        %v214 = vsel %vm202, %v196, %v213
        %v215 = vsel %vm201, %v212, %v214
        %v216 = vshll.u32 %v176, 8
        %v217 = vmul.u32.u64.compose %v216, %v215
        %v218 = vextract.low.u32 %v217
        %v219 = vextract.high.u32 %v217
        %v220 = vmul.u32.u64.compose %v216, %v211
        %v221 = vextract.low.u32 %v220
        %v222 = vextract.high.u32 %v220
        %v223 = vmul.u32 %v216, %v207
        %v224 = vadd.s32 %v219, %v221
        %vm225 = vc.u32 %v219, %v221
        %v226 = vadd.s32 %v222, 1
        %v227 = vsel %vm225, %v226, %v222
        %v228 = vadd.s32 %v223, %v227
        %v229 = vadd.s32 %v228, 536870912
        %v230 = vshrl.u32 %v229, 30
        %v231 = vshll.u32 %v230, 30
        %v232 = vsub.s32 %v228, %v231
        %vm233 = vcmp.lt.s32.totalorder %v232, 0
        %v234 = vsub.s32 0, %v232
        %v235 = vsel %vm233, %v234, %v232
        %v236 = vclz %v235
        %v237 = vsub.s32 %v236, 2
        %vm238 = vcmp.gt.s32.totalorder 0, %v237
        %v239 = vsel %vm238, 0, %v237
        %v240 = vsub.s32 32, %v239
        %v241 = vshll.u32 %v232, %v239
        %v242 = vshrl.u32 %v224, %v240
        %v243 = vor.u32 %v241, %v242
        %v244 = vsub.s32 4294967266, %v239
        %v245 = vadd.s32 %v244, 127
        %v246 = vshll.u32 %v245, 23
        %v247 = vor.u32 4788187, %v246
        %v248 = vand.u32 2147483647, %v247
        %v250 = vcvt.s32.f32 %v243
        %v251 = vmul.f32 %v250, %v248
        %v252 = vxor.u32 %v251, 2147483648
        %v253 = vsel %vm170, %v252, %v251
        %v254 = vsub.s32 4, %v230
        %v255 = vsel %vm170, %v254, %v230
        %v256 = vsel %vm169, %v167, %v253
        %v257 = vsel %vm169, 0, %v255
        %v258 = vcosq.f32.pop %v256
        %v259 = vsinq.f32.pop %v256
        %vm260 = vweird.f32 %v167
        %v261 = vand.u32 %v257, 3
        %vm262 = vcmp.lt.s32.totalorder %v261, 2
        %vm263 = vcmp.eq.s32.totalorder %v261, 0
        %v264 = vxor.u32 %v259, 2147483648
        %v265 = vsel %vm263, %v258, %v264
        %vm266 = vcmp.eq.s32.totalorder %v261, 2
        %v267 = vxor.u32 %v258, 2147483648
        %v268 = vsel %vm266, %v267, %v259
        %v269 = vsel %vm262, %v265, %v268
        %v270 = vsel %vm260, nan, %v269
        %v271 = vand.u32 2147483647, %v167
        %vm272 = vcmp.le.f32.partialorder %v271, 0.7853982
        %vm273 = vcmp.lt.s32.totalorder %v167, 0
        %v274 = vand.u32 %v167, 2139095040
        %v275 = vshrl.u32 %v274, 23
        %v276 = vsub.s32 %v275, 127
        %v277 = vand.u32 2147483647, %v167
        %v278 = vand.u32 %v277, 8388607
        %v279 = vor.u32 %v278, 8388608
        %v280 = vsub.s32 0, %v279
        %v281 = vadd.s32 %v276, 1
        %vm282 = vcmp.gt.s32.totalorder %v281, 0
        %v283 = vsel %vm282, %v281, 0
        %v284 = vshrl.u32 %v283, 5
        %v285 = vand.u32 %v283, 31
        %v286 = vsub.s32 32, %v285
        %v287 = vshrl.u32 683565275, %v286
        %v288 = vshll.u32 683565275, %v285
        %v289 = vshrl.u32 2475754826, %v286
        %v290 = vor.u32 %v288, %v289
        %v291 = vshll.u32 2475754826, %v285
        %v292 = vshrl.u32 2131351028, %v286
        %v293 = vor.u32 %v291, %v292
        %v294 = vshll.u32 2131351028, %v285
        %v295 = vshrl.u32 2102212464, %v286
        %v296 = vor.u32 %v294, %v295
        %v297 = vshll.u32 2102212464, %v285
        %v298 = vshrl.u32 920167782, %v286
        %v299 = vor.u32 %v297, %v298
        %v300 = vshll.u32 920167782, %v285
        %v301 = vshrl.u32 1326507024, %v286
        %v302 = vor.u32 %v300, %v301
        %vm303 = vcmp.lt.s32.totalorder %v284, 1
        %vm304 = vcmp.lt.s32.totalorder %v284, 2
        %vm305 = vcmp.lt.s32.totalorder %v284, 3
        %vm306 = vcmp.lt.s32.totalorder %v284, 4
        %v307 = vsel %vm303, %v287, %v290
        %v308 = vsel %vm306, %v296, 2102212464
        %v309 = vsel %vm305, %v293, %v308
        %v310 = vsel %vm304, %v307, %v309
        %v311 = vsel %vm303, %v290, %v293
        %v312 = vsel %vm306, %v299, 920167782
        %v313 = vsel %vm305, %v296, %v312
        %v314 = vsel %vm304, %v311, %v313
        %v315 = vsel %vm303, %v293, %v296
        %v316 = vsel %vm306, %v302, 1326507024
        %v317 = vsel %vm305, %v299, %v316
        %v318 = vsel %vm304, %v315, %v317
        %v319 = vshll.u32 %v279, 8
        %v320 = vmul.u32.u64.compose %v319, %v318
        %v321 = vextract.low.u32 %v320
        %v322 = vextract.high.u32 %v320
        %v323 = vmul.u32.u64.compose %v319, %v314
        %v324 = vextract.low.u32 %v323
        %v325 = vextract.high.u32 %v323
        %v326 = vmul.u32 %v319, %v310
        %v327 = vadd.s32 %v322, %v324
        %vm328 = vc.u32 %v322, %v324
        %v329 = vadd.s32 %v325, 1
        %v330 = vsel %vm328, %v329, %v325
        %v331 = vadd.s32 %v326, %v330
        %v332 = vadd.s32 %v331, 536870912
        %v333 = vshrl.u32 %v332, 30
        %v334 = vshll.u32 %v333, 30
        %v335 = vsub.s32 %v331, %v334
        %vm336 = vcmp.lt.s32.totalorder %v335, 0
        %v337 = vsub.s32 0, %v335
        %v338 = vsel %vm336, %v337, %v335
        %v339 = vclz %v338
        %v340 = vsub.s32 %v339, 2
        %vm341 = vcmp.gt.s32.totalorder 0, %v340
        %v342 = vsel %vm341, 0, %v340
        %v343 = vsub.s32 32, %v342
        %v344 = vshll.u32 %v335, %v342
        %v345 = vshrl.u32 %v327, %v343
        %v346 = vor.u32 %v344, %v345
        %v347 = vsub.s32 4294967266, %v342
        %v348 = vadd.s32 %v347, 127
        %v349 = vshll.u32 %v348, 23
        %v350 = vor.u32 4788187, %v349
        %v351 = vand.u32 2147483647, %v350
        %v353 = vcvt.s32.f32 %v346
        %v354 = vmul.f32 %v353, %v351
        %v355 = vxor.u32 %v354, 2147483648
        %v356 = vsel %vm273, %v355, %v354
        %v357 = vsub.s32 4, %v333
        %v358 = vsel %vm273, %v357, %v333
        %v359 = vsel %vm272, %v167, %v356
        %v360 = vsel %vm272, 0, %v358
        %v361 = vcosq.f32.pop %v359
        %v362 = vsinq.f32.pop %v359
        %vm363 = vweird.f32 %v167
        %v364 = vadd.s32 %v360, 3
        %v365 = vand.u32 %v364, 3
        %vm366 = vcmp.lt.s32.totalorder %v365, 2
        %vm367 = vcmp.eq.s32.totalorder %v365, 0
        %v368 = vxor.u32 %v362, 2147483648
        %v369 = vsel %vm367, %v361, %v368
        %vm370 = vcmp.eq.s32.totalorder %v365, 2
        %v371 = vxor.u32 %v361, 2147483648
        %v372 = vsel %vm370, %v371, %v362
        %v373 = vsel %vm366, %v369, %v372
        %v374 = vsel %vm363, nan, %v373
        %v375 = vlaneseq
        %v376 = vshrl.u32 %v375, 7
        %v377 = vadd.s32 %v376, 8
        %v378 = vshra.s32 %v376, 3
        %v379 = vshra.s32 %v377, 3
        %v380 = vand.u32 %v378, 1
        %v381 = vand.u32 %v379, 1
        %vm382 = vcmp.eq.s32.totalorder %v380, 0
        %vm383 = vcmp.eq.s32.totalorder %v381, 0
        %v384 = vlaneseq
        %v385 = vshrl.u32 %v384, 7
        %v386 = vsub.s32 0, %v385
        %v387 = vrot.slane %v270, %v386
        %v388 = vlaneseq
        %v389 = vshrl.u32 %v388, 7
        %v390 = vsub.s32 0, %v389
        %v391 = vrot.slane %v374, %v390
        %v392 = vsel %vm382, %v387, %v391
        %v393 = vsel %vm383, %v387, %v391
        %v394 = vshra.s32 %v376, 2
        %v395 = vshra.s32 %v377, 2
        %v396 = vand.u32 %v394, 1
        %v397 = vand.u32 %v395, 1
        %vm398 = vcmp.eq.s32.totalorder %v396, 0
        %vm399 = vcmp.eq.s32.totalorder %v397, 0
        %v400 = vlaneseq
        %v401 = vshrl.u32 %v400, 7
        %v402 = vsub.s32 1, %v401
        %v403 = vrot.slane %v270, %v402
        %v404 = vlaneseq
        %v405 = vshrl.u32 %v404, 7
        %v406 = vsub.s32 1, %v405
        %v407 = vrot.slane %v374, %v406
        %v408 = vsel %vm398, %v403, %v407
        %v409 = vsel %vm399, %v403, %v407
        %v410 = vmul.f32 %v392, %v408
        %v411 = vmul.f32 %v393, %v409
        %v412 = vshra.s32 %v376, 1
        %v413 = vshra.s32 %v377, 1
        %v414 = vand.u32 %v412, 1
        %v415 = vand.u32 %v413, 1
        %vm416 = vcmp.eq.s32.totalorder %v414, 0
        %vm417 = vcmp.eq.s32.totalorder %v415, 0
        %v418 = vlaneseq
        %v419 = vshrl.u32 %v418, 7
        %v420 = vsub.s32 2, %v419
        %v421 = vrot.slane %v270, %v420
        %v422 = vlaneseq
        %v423 = vshrl.u32 %v422, 7
        %v424 = vsub.s32 2, %v423
        %v425 = vrot.slane %v374, %v424
        %v426 = vsel %vm416, %v421, %v425
        %v427 = vsel %vm417, %v421, %v425
        %v428 = vmul.f32 %v410, %v426
        %v429 = vmul.f32 %v411, %v427
        %v430 = vand.u32 %v376, 1
        %v431 = vand.u32 %v377, 1
        %vm432 = vcmp.eq.s32.totalorder %v430, 0
        %vm433 = vcmp.eq.s32.totalorder %v431, 0
        %v434 = vlaneseq
        %v435 = vshrl.u32 %v434, 7
        %v436 = vsub.s32 3, %v435
        %v437 = vrot.slane %v270, %v436
        %v438 = vlaneseq
        %v439 = vshrl.u32 %v438, 7
        %v440 = vsub.s32 3, %v439
        %v441 = vrot.slane %v374, %v440
        %v442 = vsel %vm432, %v437, %v441
        %v443 = vsel %vm433, %v437, %v441
        %v444 = vmul.f32 %v428, %v442
        %v445 = vmul.f32 %v429, %v443
        %v446 = vld [vmem:[%s1] sm:$0xff]
        %v447 = vld [vmem:[%s1 + $0x8] sm:$0xff]
        %v448 = vld [vmem:[%s1 + $0x10] sm:$0xff]
        %v449 = vld [vmem:[%s1 + $0x18] sm:$0xff]
        %vm450 = vcmask 130048
        %v452 = vsel %vm450, %v446, 0
        %v455 = vsel %vm450, %v447, 0
        %v458 = vsel %vm450, %v448, 0
        %v461 = vsel %vm450, %v449, 0
        %463 = vmatprep.subr.mxu0 0.0
        %464 = vmatpush1.msra.mxu0 %v444
        %465 = vmatprep.subr.mxu0 0.0
        %466 = vmatpush1.msra.mxu0 %v445
        %467 = vmatprep.subr.mxu0 0.0
        %468 = vmatpush1.msra.mxu0 0.0
        %469 = vmatprep.subr.mxu0 0.0
        %470 = vmatpush1.msra.mxu0 0.0
        %471 = vmatprep.subr.mxu0 0.0
        %472 = vmatpush1.msra.mxu0 0.0
        %473 = vmatprep.subr.mxu0 0.0
        %474 = vmatpush1.msra.mxu0 0.0
        %475 = vmatprep.subr.mxu0 0.0
        %476 = vmatpush1.msra.mxu0 0.0
        %477 = vmatprep.subr.mxu0 0.0
        %478 = vmatpush1.msra.mxu0 0.0
        %479 = vmatprep.subr.mxu0 0.0
        %480 = vmatpush1.msra.mxu0 0.0
        %481 = vmatprep.subr.mxu0 0.0
        %482 = vmatpush1.msra.mxu0 0.0
        %483 = vmatprep.subr.mxu0 0.0
        %484 = vmatpush1.msra.mxu0 0.0
        %485 = vmatprep.subr.mxu0 0.0
        %486 = vmatpush1.msra.mxu0 0.0
        %487 = vmatprep.subr.mxu0 0.0
        %488 = vmatpush1.msra.mxu0 0.0
        %489 = vmatprep.subr.mxu0 0.0
        %490 = vmatpush1.msra.mxu0 0.0
        %491 = vmatprep.subr.mxu0 0.0
        %492 = vmatpush1.msra.mxu0 0.0
        %493 = vmatprep.subr.mxu0 0.0
        %494 = vmatpush1.msra.mxu0 0.0
        %495 = vmatprep.subr.mxu0 0.0
        %496 = vmatpush1.msra.mxu0 0.0
        %497 = vmatprep.subr.mxu0 0.0
        %498 = vmatpush1.msra.mxu0 0.0
        %499 = vmatprep.subr.mxu0 0.0
        %500 = vmatpush1.msra.mxu0 0.0
        %501 = vmatprep.subr.mxu0 0.0
        %502 = vmatpush1.msra.mxu0 0.0
        %503 = vmatprep.subr.mxu0 0.0
        %504 = vmatpush1.msra.mxu0 0.0
        %505 = vmatprep.subr.mxu0 0.0
        %506 = vmatpush1.msra.mxu0 0.0
        %507 = vmatprep.subr.mxu0 0.0
        %508 = vmatpush1.msra.mxu0 0.0
        %509 = vmatprep.subr.mxu0 0.0
        %510 = vmatpush1.msra.mxu0 0.0
        %511 = vmatprep.subr.mxu0 0.0
        %512 = vmatpush1.msra.mxu0 0.0
        %513 = vmatprep.subr.mxu0 0.0
        %514 = vmatpush1.msra.mxu0 0.0
        %515 = vmatprep.subr.mxu0 0.0
        %516 = vmatpush1.msra.mxu0 0.0
        %517 = vmatprep.subr.mxu0 0.0
        %518 = vmatpush1.msra.mxu0 0.0
        %519 = vmatprep.subr.mxu0 0.0
        %520 = vmatpush1.msra.mxu0 0.0
        %521 = vmatprep.subr.mxu0 0.0
        %522 = vmatpush1.msra.mxu0 0.0
        %523 = vmatprep.subr.mxu0 0.0
        %524 = vmatpush1.msra.mxu0 0.0
        %525 = vmatprep.subr.mxu0 0.0
        %526 = vmatpush1.msra.mxu0 0.0
        %527 = vmatprep.mubr.f32.mxu0 0.0
        %528 = vmatmul.mubr.f32.gmra.mrb[0].mxu0 %v452
        %v529 = vpop.f32.mrb[0].mxu0
        %v530 = vadd.f32 0.0, %v529
        %v531 = vpop.f32.mrb[0].mxu0
        %532 = vmatprep.mubr.f32.mxu0 0.0
        %533 = vmatmul.mubr.f32.gmra.mrb[0].mxu0 %v455
        %v534 = vpop.f32.mrb[0].mxu0
        %v535 = vadd.f32 0.0, %v534
        %v536 = vpop.f32.mrb[0].mxu0
        %537 = vmatprep.mubr.f32.mxu0 0.0
        %538 = vmatmul.mubr.f32.gmra.mrb[0].mxu0 %v458
        %v539 = vpop.f32.mrb[0].mxu0
        %v540 = vadd.f32 0.0, %v539
        %v541 = vpop.f32.mrb[0].mxu0
        %542 = vmatprep.mubr.f32.mxu0 0.0
        %543 = vmatmul.mubr.f32.gmra.mrb[0].mxu0 %v461
        %v544 = vpop.f32.mrb[0].mxu0
        %v545 = vadd.f32 0.0, %v544
        %v546 = vpop.f32.mrb[0].mxu0
        %547 = vdwg.mxu0
        %v548 = vmul.f32 %v530, %v530
        %v549 = vmul.f32 %v535, %v535
        %v550 = vmul.f32 %v540, %v540
        %v551 = vmul.f32 %v545, %v545
        %v552 = vadd.f32 %v548, %v550
        %v553 = vadd.f32 %v549, %v551
        %v554 = vld [vmem:[%s2] sm:$0xff]
        %v556 = vsel %vm450, %v554, 0
        %558 = vmatprep.subr.mxu0 0.0
        %559 = vmatpush1.msra.mxu0 %v552
        %560 = vmatprep.subr.mxu0 0.0
        %561 = vmatpush1.msra.mxu0 %v553
        %562 = vmatprep.subr.mxu0 0.0
        %563 = vmatpush1.msra.mxu0 0.0
        %564 = vmatprep.subr.mxu0 0.0
        %565 = vmatpush1.msra.mxu0 0.0
        %566 = vmatprep.subr.mxu0 0.0
        %567 = vmatpush1.msra.mxu0 0.0
        %568 = vmatprep.subr.mxu0 0.0
        %569 = vmatpush1.msra.mxu0 0.0
        %570 = vmatprep.subr.mxu0 0.0
        %571 = vmatpush1.msra.mxu0 0.0
        %572 = vmatprep.subr.mxu0 0.0
        %573 = vmatpush1.msra.mxu0 0.0
        %574 = vmatprep.subr.mxu0 0.0
        %575 = vmatpush1.msra.mxu0 0.0
        %576 = vmatprep.subr.mxu0 0.0
        %577 = vmatpush1.msra.mxu0 0.0
        %578 = vmatprep.subr.mxu0 0.0
        %579 = vmatpush1.msra.mxu0 0.0
        %580 = vmatprep.subr.mxu0 0.0
        %581 = vmatpush1.msra.mxu0 0.0
        %582 = vmatprep.subr.mxu0 0.0
        %583 = vmatpush1.msra.mxu0 0.0
        %584 = vmatprep.subr.mxu0 0.0
        %585 = vmatpush1.msra.mxu0 0.0
        %586 = vmatprep.subr.mxu0 0.0
        %587 = vmatpush1.msra.mxu0 0.0
        %588 = vmatprep.subr.mxu0 0.0
        %589 = vmatpush1.msra.mxu0 0.0
        %590 = vmatprep.subr.mxu0 0.0
        %591 = vmatpush1.msra.mxu0 0.0
        %592 = vmatprep.subr.mxu0 0.0
        %593 = vmatpush1.msra.mxu0 0.0
        %594 = vmatprep.subr.mxu0 0.0
        %595 = vmatpush1.msra.mxu0 0.0
        %596 = vmatprep.subr.mxu0 0.0
        %597 = vmatpush1.msra.mxu0 0.0
        %598 = vmatprep.subr.mxu0 0.0
        %599 = vmatpush1.msra.mxu0 0.0
        %600 = vmatprep.subr.mxu0 0.0
        %601 = vmatpush1.msra.mxu0 0.0
        %602 = vmatprep.subr.mxu0 0.0
        %603 = vmatpush1.msra.mxu0 0.0
        %604 = vmatprep.subr.mxu0 0.0
        %605 = vmatpush1.msra.mxu0 0.0
        %606 = vmatprep.subr.mxu0 0.0
        %607 = vmatpush1.msra.mxu0 0.0
        %608 = vmatprep.subr.mxu0 0.0
        %609 = vmatpush1.msra.mxu0 0.0
        %610 = vmatprep.subr.mxu0 0.0
        %611 = vmatpush1.msra.mxu0 0.0
        %612 = vmatprep.subr.mxu0 0.0
        %613 = vmatpush1.msra.mxu0 0.0
        %614 = vmatprep.subr.mxu0 0.0
        %615 = vmatpush1.msra.mxu0 0.0
        %616 = vmatprep.subr.mxu0 0.0
        %617 = vmatpush1.msra.mxu0 0.0
        %618 = vmatprep.subr.mxu0 0.0
        %619 = vmatpush1.msra.mxu0 0.0
        %620 = vmatprep.subr.mxu0 0.0
        %621 = vmatpush1.msra.mxu0 0.0
        %622 = vmatprep.mubr.f32.mxu0 0.0
        %623 = vmatmul.mubr.f32.gmra.mrb[0].mxu0 %v556
        %v624 = vpop.f32.mrb[0].mxu0
        %v625 = vadd.f32 0.0, %v624
        %v626 = vpop.f32.mrb[0].mxu0
        %627 = vdwg.mxu0
        %628 = vst [vmem:[%s161] sm:$0xff] %v625
        %s629 = sand.u32 %s93, 1
        %s630 = scalar_lea.sflag [#allocation3], %s629
        %s631 = sand.u32 %s93, 1
        %s632 = smul.addr %s631, 8
        %s633 = scalar_lea.vmem [#allocation2], %s632
        // Predicated region
        $region33: #{tpu_custom_call.1} parent=31 // pred_check
          %p634 = pneg %p103
        $region34: #{tpu_custom_call.1} parent=31 // pred_check_branch
          %636 = sbr.rel (%p634) target = $region36
        $region35: #{tpu_custom_call.1} parent=31 // pred_region
          %s638 = ssub.s32 128, 128
          %639 = vsyncadd %s630, %s638
          %s640 = smul.addr %s17, 128
          %s641 = scalar_lea.hbm %s3, %s640
          %s643 = sshll.u32 %s633, 4
          %s644 = int_to_ptr.vmem [resolvable:$true] %s643
          %646 = dma.vmem_to_hbm [thread:$0]  %s644, 128, %s641, %s630
        $region36: #{tpu_custom_call.1} parent=31 // pred_fallthru
          _
      $region32: #{tpu_custom_call.1} parent=5 // pred_fallthru
        _
      %p647 = scmp.le.s32.totalorder 2, %s12
      // Predicated region
      $region37: #{tpu_custom_call.1} parent=5 // pred_check
        %p648 = pneg %p647
      $region38: #{tpu_custom_call.1} parent=5 // pred_check_branch
        %650 = sbr.rel (%p648) target = $region40
      $region39: #{tpu_custom_call.1} parent=5 // pred_region
        %s651 = ssub.s32 %s12, 2
        // Predicated region
        $region41: #{tpu_custom_call.1} parent=39 // pred_check
          %p652 = pneg %p109
        $region42: #{tpu_custom_call.1} parent=39 // pred_check_branch
          %654 = sbr.rel (%p652) target = $region44
        $region43: #{tpu_custom_call.1} parent=39 // pred_region
          %s655 = sand.u32 %s94, 1
          %s656 = scalar_lea.sflag [#allocation3], %s655
          %s657 = sand.u32 %s94, 1
          %s658 = smul.addr %s657, 8
          %s659 = scalar_lea.vmem [#allocation2], %s658
          %660 = dma.done %s656, 128
        $region44: #{tpu_custom_call.1} parent=39 // pred_fallthru
          _
      $region40: #{tpu_custom_call.1} parent=5 // pred_fallthru
        _
    $region6: #{tpu_custom_call.1} parent=1 // loop_footer
      %s16 = sadd.s32 1, %s12
    $region7: #{tpu_custom_call.1} parent=1 // loop_footer_branch
      %11 = sbr.rel target = $region3
    $region8: #{tpu_custom_call.1} parent=1 // loop_exit
      _
    %661 = vsyncpa [#allocation3], 1
    %s662 = scalar_lea.sflag [#allocation3], 1
    %663 = vsyncpa %s662, 1

</llo_original>
